<compile_context>
chip_gen: v7x
topology: tpu7x:2x2x1
jax: 0.10.0
libtpu: 0.0.40
codegen_flags: <defaults>
</compile_context>

<pallas_src>
import math

import jax
import jax.numpy as jnp
from jax.experimental import pallas as pl
from jax.experimental.pallas import tpu as pltpu

# Set to jnp.bfloat16 on v6e/v7x for ~2x MXU throughput (accumulation and all
# softmax / bias math stay in f32).  Default f32 preserves reference numerics.
MATMUL_DTYPE = jnp.float32

_VMEM_LIMIT = 32 * 1024 * 1024  # explicit scoped-VMEM budget, safe on v5e..v7x


def _ceil_to(x, m):
    return ((x + m - 1) // m) * m


# ----------------------------------------------------------------------------
# Tiled linear:  y = x @ w + b   (x: (M,K), w: (K,N), b: (N,))
# ----------------------------------------------------------------------------
def linear(x2d, w, b, *, tm=256, tn=256, tk=256):
    M, K = x2d.shape
    _, N = w.shape

    # Clamp tiles to (padded) dims; keep (8,128) legality.
    tm = min(tm, _ceil_to(M, 8))
    tn = min(tn, _ceil_to(N, 128))
    tk = min(tk, _ceil_to(K, 128))
    Mp, Np, Kp = _ceil_to(M, tm), _ceil_to(N, tn), _ceil_to(K, tk)

    xp = x2d if (Mp == M and Kp == K) else jnp.pad(x2d, ((0, Mp - M), (0, Kp - K)))
    wpd = w if (Kp == K and Np == N) else jnp.pad(w, ((0, Kp - K), (0, Np - N)))
    bpd = (b if Np == N else jnp.pad(b, (0, Np - N))).reshape(1, Np).astype(jnp.float32)

    grid = (Mp // tm, Np // tn, Kp // tk)
    nk = grid[2]

    def kernel(x_ref, w_ref, b_ref, o_ref, acc_ref):
        @pl.when(pl.program_id(2) == 0)
        def _():
            acc_ref[...] = jnp.zeros_like(acc_ref)

        acc_ref[...] += jnp.dot(
            x_ref[...], w_ref[...], preferred_element_type=jnp.float32
        )

        @pl.when(pl.program_id(2) == nk - 1)
        def _():
            o_ref[...] = (acc_ref[...] + b_ref[...]).astype(o_ref.dtype)

    out = pl.pallas_call(
        kernel,
        out_shape=jax.ShapeDtypeStruct((Mp, Np), jnp.float32),
        grid_spec=pltpu.PrefetchScalarGridSpec(
            num_scalar_prefetch=0,
            grid=grid,
            in_specs=[
                pl.BlockSpec((tm, tk), lambda i, j, k: (i, k)),
                pl.BlockSpec((tk, tn), lambda i, j, k: (k, j)),
                pl.BlockSpec((1, tn), lambda i, j, k: (0, j)),
            ],
            out_specs=pl.BlockSpec((tm, tn), lambda i, j, k: (i, j)),
            scratch_shapes=[pltpu.VMEM((tm, tn), jnp.float32)],
        ),
        compiler_params=pltpu.CompilerParams(
            dimension_semantics=("parallel", "parallel", "arbitrary"),
            vmem_limit_bytes=_VMEM_LIMIT,
        ),
    )(xp, wpd, bpd)
    return out[:M, :N]


# ----------------------------------------------------------------------------
# Attention core + fused output projection.
#   q: (N,S,E)  k,v: (N,T,E)  add_mask: (S,T) f32 additive (0 / -1e12)
#   out[b] = concat_h( softmax(q_h k_h^T + mask) v_h ) @ Wp + bp   -> (N,S,E)
# ----------------------------------------------------------------------------
def attention_projection(q, k, v, add_mask, wp, bp, heads):
    N, S, E = q.shape
    T = k.shape[1]
    d = E // heads
    # TODO(synk): for long sequences, tile the T (key) axis flash-style instead
    # of materializing the full (S, T) score matrix per head.

    def kernel(q_ref, k_ref, v_ref, m_ref, wp_ref, bp_ref, o_ref, ctx_ref):
        q2 = q_ref[0]          # (S, E)   1/sqrt(d) already folded into W_q
        k2 = k_ref[0]          # (T, E)
        v2 = v_ref[0]          # (T, E)
        m = m_ref[...]         # (S, T) additive mask, f32

        for h in range(heads):                       # static unrolled loop
            lo, hi = h * d, (h + 1) * d
            qh = q2[:, lo:hi]                        # (S, d)
            kh = k2[:, lo:hi]                        # (T, d)
            vh = v2[:, lo:hi]                        # (T, d)
            s = jax.lax.dot_general(
                qh, kh, (((1,), (1,)), ((), ())),
                preferred_element_type=jnp.float32,
            ) + m                                    # (S, T)
            s = s - jnp.max(s, axis=-1, keepdims=True)
            p = jnp.exp(s)
            p = p * pl.reciprocal(jnp.sum(p, axis=-1, keepdims=True), approx=True)
            ctx_ref[:, lo:hi] = jnp.dot(
                p.astype(v2.dtype), vh, preferred_element_type=jnp.float32
            )

        proj = jnp.dot(
            ctx_ref[...].astype(wp_ref.dtype), wp_ref[...],
            preferred_element_type=jnp.float32,
        ) + bp_ref[...]
        o_ref[0] = proj.astype(o_ref.dtype)

    return pl.pallas_call(
        kernel,
        out_shape=jax.ShapeDtypeStruct((N, S, E), jnp.float32),
        grid_spec=pltpu.PrefetchScalarGridSpec(
            num_scalar_prefetch=0,
            grid=(N,),
            in_specs=[
                pl.BlockSpec((1, S, E), lambda b: (b, 0, 0)),
                pl.BlockSpec((1, T, E), lambda b: (b, 0, 0)),
                pl.BlockSpec((1, T, E), lambda b: (b, 0, 0)),
                pl.BlockSpec((S, T), lambda b: (0, 0)),
                pl.BlockSpec((E, E), lambda b: (0, 0)),
                pl.BlockSpec((1, E), lambda b: (0, 0)),
            ],
            out_specs=pl.BlockSpec((1, S, E), lambda b: (b, 0, 0)),
            scratch_shapes=[pltpu.VMEM((S, E), jnp.float32)],
        ),
        compiler_params=pltpu.CompilerParams(
            dimension_semantics=("parallel",),
            vmem_limit_bytes=_VMEM_LIMIT,
        ),
    )(q, k, v, add_mask, wp, bp.reshape(1, E).astype(jnp.float32))


# ----------------------------------------------------------------------------
# MultiHeadedAttention.forward  (key, value, query, mask) -> (N, S, E)
# ----------------------------------------------------------------------------
def multi_head_attention(p, key_x, value_x, query_x, mask, heads):
    N, S, E = query_x.shape
    T = key_x.shape[1]
    d = E // heads
    scale = 1.0 / math.sqrt(d)
    dt = MATMUL_DTYPE

    # Fold the 1/sqrt(d) score scale into the query projection (exact).
    wq = (p["wq"] * scale).astype(dt)
    bq = p["bq"] * scale
    wk, wv = p["wk"].astype(dt), p["wv"].astype(dt)

    q_in = query_x.reshape(N * S, E).astype(dt)

    if (key_x is query_x) and (value_x is query_x):
        # Self-attention: fused QKV projection, one launch.
        w_qkv = jnp.concatenate([wq, wk, wv], axis=1)          # (E, 3E)
        b_qkv = jnp.concatenate([bq, p["bk"], p["bv"]])
        qkv = linear(q_in, w_qkv, b_qkv)                       # (N*S, 3E)
        q3 = qkv[:, :E].reshape(N, S, E)
        k3 = qkv[:, E:2 * E].reshape(N, S, E)
        v3 = qkv[:, 2 * E:].reshape(N, S, E)
        Tkv = S
    else:
        kv_in = key_x.reshape(N * T, E).astype(dt)
        if key_x is value_x:
            # Cross-attention with shared memory tensor: fused K|V projection.
            w_kv = jnp.concatenate([wk, wv], axis=1)           # (E, 2E)
            b_kv = jnp.concatenate([p["bk"], p["bv"]])
            kv = linear(kv_in, w_kv, b_kv)                     # (N*T, 2E)
            k3 = kv[:, :E].reshape(N, T, E)
            v3 = kv[:, E:].reshape(N, T, E)
        else:
            v_in = value_x.reshape(N * T, E).astype(dt)
            k3 = linear(kv_in, wk, p["bk"]).reshape(N, T, E)
            v3 = linear(v_in, wv, p["bv"]).reshape(N, T, E)
        q3 = linear(q_in, wq, bq).reshape(N, S, E)
        Tkv = T

    if mask is None:
        add_mask = jnp.zeros((S, Tkv), jnp.float32)
    else:
        add_mask = jnp.where(mask == 0, jnp.float32(-1e12), jnp.float32(0.0))

    # TODO(synk): nn.Dropout on the scores has no effect at inference; omitted.
    return attention_projection(
        q3.astype(dt), k3.astype(dt), v3.astype(dt),
        add_mask, p["wp"].astype(dt), p["bp"], heads,
    )


# ----------------------------------------------------------------------------
# Pure-JAX reference (mirrors the PyTorch forward exactly) for validation.
# ----------------------------------------------------------------------------
def mha_reference(p, key_x, value_x, query_x, mask, heads):
    N, S, E = query_x.shape
    d = E // heads

    def lin(x, w, b):
        return x @ w + b

    k = lin(key_x, p["wk"], p["bk"]).reshape(N, -1, heads, d).transpose(0, 2, 1, 3)
    v = lin(value_x, p["wv"], p["bv"]).reshape(N, -1, heads, d).transpose(0, 2, 1, 3)
    q = lin(query_x, p["wq"], p["bq"]).reshape(N, -1, heads, d).transpose(0, 2, 1, 3)
    s = jnp.einsum("nhsd,nhtd->nhst", q, k) / math.sqrt(d)
    if mask is not None:
        s = jnp.where(mask == 0, jnp.float32(-1e12), s)
    attn = jax.nn.softmax(s, axis=-1)
    o = jnp.einsum("nhst,nhtd->nhsd", attn, v)
    o = o.transpose(0, 2, 1, 3).reshape(N, S, E)
    return o @ p["wp"] + p["bp"]


def init_params(key, E):
    ks = jax.random.split(key, 8)
    mk = lambda k: jax.random.normal(k, (E, E), jnp.float32) * 0.02
    vb = lambda k: jax.random.normal(k, (E,), jnp.float32) * 0.02
    return {
        "wk": mk(ks[0]), "bk": vb(ks[1]),
        "wq": mk(ks[2]), "bq": vb(ks[3]),
        "wv": mk(ks[4]), "bv": vb(ks[5]),
        "wp": mk(ks[6]), "bp": vb(ks[7]),
    }


# ----------------------------------------------------------------------------
if __name__ == "__main__":
    N, S, Tm = 2, 8, 16          # batch, query length, memory length
    E, HEADS = 32, 4

    root = jax.random.PRNGKey(0)
    k_p, k_x, k_m = jax.random.split(root, 3)
    params = init_params(k_p, E)
    x = jax.random.normal(k_x, (N, S, E), jnp.float32)       # decoder-side input
    mem = jax.random.normal(k_m, (N, Tm, E), jnp.float32)    # encoder memory

    # 1) Self-attention with a causal mask (fused QKV path).
    causal = jnp.tril(jnp.ones((S, S), jnp.int32))
    out_self = multi_head_attention(params, x, x, x, causal, HEADS)

    # 2) Cross-attention, no mask (fused K|V path, separate Q).
    out_cross = multi_head_attention(params, mem, mem, x, None, HEADS)

    out_self, out_cross = jax.block_until_ready((out_self, out_cross))

    assert out_self.shape == (N, S, E), out_self.shape
    assert out_cross.shape == (N, S, E), out_cross.shape
    assert bool(jnp.all(jnp.isfinite(out_self)))
    assert bool(jnp.all(jnp.isfinite(out_cross)))

    ref_self = mha_reference(params, x, x, x, causal, HEADS)
    ref_cross = mha_reference(params, mem, mem, x, None, HEADS)
    assert bool(jnp.allclose(out_self, ref_self, rtol=5e-3, atol=5e-4))
    assert bool(jnp.allclose(out_cross, ref_cross, rtol=5e-3, atol=5e-4))

    print("KERNEL_OK")
</pallas_src>

<mosaic_0001>
module attributes {stable_mosaic.version = 11 : i64} {
  func.func @kernel(%arg0: i32, %arg1: i32, %arg2: i32, %arg3: memref<16x128xf32, #tpu.memory_space<vmem>>, %arg4: memref<128x128xf32, #tpu.memory_space<vmem>>, %arg5: memref<1x128xf32, #tpu.memory_space<vmem>>, %arg6: memref<16x128xf32, #tpu.memory_space<vmem>>, %arg7: memref<16x128xf32, #tpu.memory_space<vmem>>) attributes {dimension_semantics = [#tpu.dimension_semantics<parallel>, #tpu.dimension_semantics<parallel>, #tpu.dimension_semantics<arbitrary>], iteration_bounds = array<i64: 1, 1, 1>, scalar_prefetch = 0 : i64, scratch_operands = 1 : i64, tpu.core_type = #tpu.core_type<tc>, window_params = [{transform_indices = @transform_0, window_bounds = array<i64: 16, 128>}, {transform_indices = @transform_1, window_bounds = array<i64: 128, 128>}, {transform_indices = @transform_2, window_bounds = array<i64: 1, 128>}, {transform_indices = @transform_3, window_bounds = array<i64: 16, 128>}]} {
    %c0_i32 = arith.constant 0 : i32
    %0 = arith.cmpi eq, %arg2, %c0_i32 : i32
    %1 = arith.extui %0 : i1 to i32
    %c0_i32_0 = arith.constant 0 : i32
    %2 = arith.cmpi ne, %1, %c0_i32_0 : i32
    scf.if %2 {
      %cst_10 = arith.constant 0.000000e+00 : f32
      %12 = vector.broadcast %cst_10 : f32 to vector<16x128xf32>
      %c0_11 = arith.constant 0 : index
      %c0_12 = arith.constant 0 : index
      %13 = vector.load %arg7[%c0_11, %c0_12] : memref<16x128xf32, #tpu.memory_space<vmem>>, vector<16x128xf32>
      tpu.vector_store %arg7[%c0_11, %c0_12], %12 {strides = array<i32>} : memref<16x128xf32, #tpu.memory_space<vmem>>, vector<16x128xf32>,
    } else {
    }
    %c0 = arith.constant 0 : index
    %c0_1 = arith.constant 0 : index
    %3 = vector.load %arg7[%c0, %c0_1] : memref<16x128xf32, #tpu.memory_space<vmem>>, vector<16x128xf32>
    %c0_2 = arith.constant 0 : index
    %c0_3 = arith.constant 0 : index
    %4 = vector.load %arg3[%c0_2, %c0_3] : memref<16x128xf32, #tpu.memory_space<vmem>>, vector<16x128xf32>
    %c0_4 = arith.constant 0 : index
    %c0_5 = arith.constant 0 : index
    %5 = vector.load %arg4[%c0_4, %c0_5] : memref<128x128xf32, #tpu.memory_space<vmem>>, vector<128x128xf32>
    %cst = arith.constant dense<0.000000e+00> : vector<16x128xf32>
    %6 = tpu.matmul %4, %5, %cst {dimension_numbers = #tpu.dot_dimension_numbers<[1], [0], [0], [1], [0, 0, 1, 1], [], []>} : vector<16x128xf32>, vector<128x128xf32>, vector<16x128xf32> -> vector<16x128xf32>
    %7 = arith.addf %3, %6 : vector<16x128xf32>
    %c0_6 = arith.constant 0 : index
    %c0_7 = arith.constant 0 : index
    %8 = vector.load %arg7[%c0_6, %c0_7] : memref<16x128xf32, #tpu.memory_space<vmem>>, vector<16x128xf32>
    tpu.vector_store %arg7[%c0_6, %c0_7], %7 {strides = array<i32>} : memref<16x128xf32, #tpu.memory_space<vmem>>, vector<16x128xf32>,
    %c0_i32_8 = arith.constant 0 : i32
    %9 = arith.cmpi eq, %arg2, %c0_i32_8 : i32
    %10 = arith.extui %9 : i1 to i32
    %c0_i32_9 = arith.constant 0 : i32
    %11 = arith.cmpi ne, %10, %c0_i32_9 : i32
    scf.if %11 {
      %c0_10 = arith.constant 0 : index
      %c0_11 = arith.constant 0 : index
      %12 = vector.load %arg7[%c0_10, %c0_11] : memref<16x128xf32, #tpu.memory_space<vmem>>, vector<16x128xf32>
      %c0_12 = arith.constant 0 : index
      %c0_13 = arith.constant 0 : index
      %13 = vector.load %arg5[%c0_12, %c0_13] : memref<1x128xf32, #tpu.memory_space<vmem>>, vector<1x128xf32>
      %14 = vector.broadcast %13 : vector<1x128xf32> to vector<16x128xf32>
      %15 = arith.addf %12, %14 : vector<16x128xf32>
      %c0_14 = arith.constant 0 : index
      %c0_15 = arith.constant 0 : index
      %16 = vector.load %arg6[%c0_14, %c0_15] : memref<16x128xf32, #tpu.memory_space<vmem>>, vector<16x128xf32>
      tpu.vector_store %arg6[%c0_14, %c0_15], %15 {strides = array<i32>} : memref<16x128xf32, #tpu.memory_space<vmem>>, vector<16x128xf32>,
    } else {
    }
    return
  }
  func.func @transform_0(%arg0: i32, %arg1: i32, %arg2: i32) -> (i32, i32) {
    %c0_i32 = arith.constant 0 : i32
    return %arg0, %arg2 : i32, i32
  }
  func.func @transform_1(%arg0: i32, %arg1: i32, %arg2: i32) -> (i32, i32) {
    %c0_i32 = arith.constant 0 : i32
    return %arg2, %arg1 : i32, i32
  }
  func.func @transform_2(%arg0: i32, %arg1: i32, %arg2: i32) -> (i32, i32) {
    %c0_i32 = arith.constant 0 : i32
    %c0_i32_0 = arith.constant 0 : i32
    return %c0_i32, %arg1 : i32, i32
  }
  func.func @transform_3(%arg0: i32, %arg1: i32, %arg2: i32) -> (i32, i32) {
    %c0_i32 = arith.constant 0 : i32
    return %arg0, %arg1 : i32, i32
  }
}

</mosaic_0001>

<llo_original>
// kernel: tpu_custom_call.1
$region0: #{tpu_custom_call.1}
  #allocation0 [shape = 'u32[]', space=smem, size = 0x4, offset = 0x4, fixed_abs, tag = 'smem constant byte address 0x4 - core index']
  #allocation1 [shape = 'u32[144,128]{1,0:T(1,128)}', space=vmem, size = 0x12000, scoped, tag = 'internal scratch']
  #allocation2 [shape = 'f32[16,128]{1,0:T(8,128)}', space=vmem, size = 0x2000, scoped, tag = 'scratch operand']
  %s0 = inlined_call_operand.hbm [shape: f32[16,128], index: 0, kind: input, shape index: {}]
  %s1 = inlined_call_operand.hbm [shape: f32[128,128], index: 1, kind: input, shape index: {}]
  %s2 = inlined_call_operand.vmem [shape: f32[1,128], index: 2, kind: input, shape index: {}]
  %s3 = inlined_call_operand.hbm [shape: f32[16,128], index: 3, kind: output, shape index: {}]
  %s4 = sld [smem:[#allocation0]]
  $region38: #{tpu_custom_call.1} parent=0
    _
  %s6 = ssub.s32 1, %s4
  %s7 = scalar_select 0, %s6, %s4
  $region1: #{tpu_custom_call.1} parent=0
    #allocation3 [shape = 'u8[8192]{0}', space=vmem, size = 0x2000, scoped, tag = 'input window, operand 0, single buffered']
    #allocation4 [shape = 's32[1]{0}', space=sflag, size = 0x4, scoped, tag = 'scoped memory for tpu_custom_call.1']
    #allocation5 [shape = 's32[1]{0}', space=sflag, size = 0x4, scoped, tag = 'scoped memory for tpu_custom_call.1']
    #allocation6 [shape = 'u8[65536]{0}', space=vmem, size = 0x10000, scoped, tag = 'input window, operand 1, single buffered']
    #allocation7 [shape = 's32[1]{0}', space=sflag, size = 0x4, scoped, tag = 'scoped memory for tpu_custom_call.1']
    #allocation8 [shape = 'u8[8192]{0}', space=vmem, size = 0x2000, scoped, tag = 'output window, operand 0, single buffered']
    %8 = vsyncpa [#allocation4], 0
    %9 = vsyncpa [#allocation7], 0
    %10 = vsyncpa [#allocation5], 0
    // Predicated region
    $region2: #{tpu_custom_call.1} parent=1 // pred_check
      _
    $region3: #{tpu_custom_call.1} parent=1 // pred_check_branch
      %12 = sbr.rel (0) target = $region5
    $region4: #{tpu_custom_call.1} parent=1 // pred_region
      %s14 = ssub.s32 256, 256
      %15 = vsyncadd [#allocation4], %s14
      %s16 = sshll.u32 [#allocation3], 4
      %s17 = int_to_ptr.vmem [resolvable:$true] %s16
      %22 = dma.hbm_to_vmem [thread:$0]  %s0, 256, %s17, [#allocation4], 128, 128, 8
    $region5: #{tpu_custom_call.1} parent=1 // pred_fallthru
      _
    // Predicated region
    $region6: #{tpu_custom_call.1} parent=1 // pred_check
      _
    $region7: #{tpu_custom_call.1} parent=1 // pred_check_branch
      %24 = sbr.rel (0) target = $region9
    $region8: #{tpu_custom_call.1} parent=1 // pred_region
      %s26 = ssub.s32 2048, 2048
      %27 = vsyncadd [#allocation7], %s26
      %s28 = sshll.u32 [#allocation6], 4
      %s29 = int_to_ptr.vmem [resolvable:$true] %s28
      %34 = dma.hbm_to_vmem [thread:$0]  %s1, 2048, %s29, [#allocation7], 128, 128, 8
    $region9: #{tpu_custom_call.1} parent=1 // pred_fallthru
      _
    // Predicated region
    $region10: #{tpu_custom_call.1} parent=1 // pred_check
      _
    $region11: #{tpu_custom_call.1} parent=1 // pred_check_branch
      %36 = sbr.rel (0) target = $region13
    $region12: #{tpu_custom_call.1} parent=1 // pred_region
      _
    $region13: #{tpu_custom_call.1} parent=1 // pred_fallthru
      _
    // Predicated region
    $region14: #{tpu_custom_call.1} parent=1 // pred_check
      _
    $region15: #{tpu_custom_call.1} parent=1 // pred_check_branch
      %38 = sbr.rel (0) target = $region17
    $region16: #{tpu_custom_call.1} parent=1 // pred_region
      %39 = dma.done [#allocation4], 256
    $region17: #{tpu_custom_call.1} parent=1 // pred_fallthru
      _
    // Predicated region
    $region18: #{tpu_custom_call.1} parent=1 // pred_check
      _
    $region19: #{tpu_custom_call.1} parent=1 // pred_check_branch
      %41 = sbr.rel (0) target = $region21
    $region20: #{tpu_custom_call.1} parent=1 // pred_region
      %42 = dma.done [#allocation7], 2048
    $region21: #{tpu_custom_call.1} parent=1 // pred_fallthru
      _
    %p43 = scmp.eq.s32.totalorder 0, 0
    // Predicated region
    $region22: #{tpu_custom_call.1} parent=1 // pred_check
      %p44 = pneg %p43
    $region23: #{tpu_custom_call.1} parent=1 // pred_check_branch
      %46 = sbr.rel (%p44) target = $region25
    $region24: #{tpu_custom_call.1} parent=1 // pred_region
      %47 = vst [vmem:[#allocation2] sm:$0xff] 0.0
      %48 = vst [vmem:[#allocation2 + $0x8] sm:$0xff] 0.0
    $region25: #{tpu_custom_call.1} parent=1 // pred_fallthru
      _
    %v49 = vld [vmem:[#allocation2] sm:$0xff]
    %v50 = vld [vmem:[#allocation2 + $0x8] sm:$0xff]
    %v51 = vld [vmem:[#allocation3] sm:$0xff]
    %v52 = vld [vmem:[#allocation3 + $0x8] sm:$0xff]
    %v53 = vld [vmem:[#allocation6] sm:$0xff]
    %v54 = vld [vmem:[#allocation6 + $0x8] sm:$0xff]
    %v55 = vld [vmem:[#allocation6 + $0x10] sm:$0xff]
    %v56 = vld [vmem:[#allocation6 + $0x18] sm:$0xff]
    %v57 = vld [vmem:[#allocation6 + $0x20] sm:$0xff]
    %v58 = vld [vmem:[#allocation6 + $0x28] sm:$0xff]
    %v59 = vld [vmem:[#allocation6 + $0x30] sm:$0xff]
    %v60 = vld [vmem:[#allocation6 + $0x38] sm:$0xff]
    %v61 = vld [vmem:[#allocation6 + $0x40] sm:$0xff]
    %v62 = vld [vmem:[#allocation6 + $0x48] sm:$0xff]
    %v63 = vld [vmem:[#allocation6 + $0x50] sm:$0xff]
    %v64 = vld [vmem:[#allocation6 + $0x58] sm:$0xff]
    %v65 = vld [vmem:[#allocation6 + $0x60] sm:$0xff]
    %v66 = vld [vmem:[#allocation6 + $0x68] sm:$0xff]
    %v67 = vld [vmem:[#allocation6 + $0x70] sm:$0xff]
    %v68 = vld [vmem:[#allocation6 + $0x78] sm:$0xff]
    %69 = vmatprep.subr.mxu0 0.0
    %70 = vmatpush1.msra.mxu0 %v53
    %71 = vmatprep.subr.mxu0 0.0
    %72 = vmatpush1.msra.mxu0 %v54
    %73 = vmatprep.subr.mxu0 0.0
    %74 = vmatpush1.msra.mxu0 %v55
    %75 = vmatprep.subr.mxu0 0.0
    %76 = vmatpush1.msra.mxu0 %v56
    %77 = vmatprep.subr.mxu0 0.0
    %78 = vmatpush1.msra.mxu0 %v57
    %79 = vmatprep.subr.mxu0 0.0
    %80 = vmatpush1.msra.mxu0 %v58
    %81 = vmatprep.subr.mxu0 0.0
    %82 = vmatpush1.msra.mxu0 %v59
    %83 = vmatprep.subr.mxu0 0.0
    %84 = vmatpush1.msra.mxu0 %v60
    %85 = vmatprep.subr.mxu0 0.0
    %86 = vmatpush1.msra.mxu0 %v61
    %87 = vmatprep.subr.mxu0 0.0
    %88 = vmatpush1.msra.mxu0 %v62
    %89 = vmatprep.subr.mxu0 0.0
    %90 = vmatpush1.msra.mxu0 %v63
    %91 = vmatprep.subr.mxu0 0.0
    %92 = vmatpush1.msra.mxu0 %v64
    %93 = vmatprep.subr.mxu0 0.0
    %94 = vmatpush1.msra.mxu0 %v65
    %95 = vmatprep.subr.mxu0 0.0
    %96 = vmatpush1.msra.mxu0 %v66
    %97 = vmatprep.subr.mxu0 0.0
    %98 = vmatpush1.msra.mxu0 %v67
    %99 = vmatprep.subr.mxu0 0.0
    %100 = vmatpush1.msra.mxu0 %v68
    %101 = vmatprep.subr.mxu0 0.0
    %102 = vmatpush1.msra.mxu0 0.0
    %103 = vmatprep.subr.mxu0 0.0
    %104 = vmatpush1.msra.mxu0 0.0
    %105 = vmatprep.subr.mxu0 0.0
    %106 = vmatpush1.msra.mxu0 0.0
    %107 = vmatprep.subr.mxu0 0.0
    %108 = vmatpush1.msra.mxu0 0.0
    %109 = vmatprep.subr.mxu0 0.0
    %110 = vmatpush1.msra.mxu0 0.0
    %111 = vmatprep.subr.mxu0 0.0
    %112 = vmatpush1.msra.mxu0 0.0
    %113 = vmatprep.subr.mxu0 0.0
    %114 = vmatpush1.msra.mxu0 0.0
    %115 = vmatprep.subr.mxu0 0.0
    %116 = vmatpush1.msra.mxu0 0.0
    %117 = vmatprep.subr.mxu0 0.0
    %118 = vmatpush1.msra.mxu0 0.0
    %119 = vmatprep.subr.mxu0 0.0
    %120 = vmatpush1.msra.mxu0 0.0
    %121 = vmatprep.subr.mxu0 0.0
    %122 = vmatpush1.msra.mxu0 0.0
    %123 = vmatprep.subr.mxu0 0.0
    %124 = vmatpush1.msra.mxu0 0.0
    %125 = vmatprep.subr.mxu0 0.0
    %126 = vmatpush1.msra.mxu0 0.0
    %127 = vmatprep.subr.mxu0 0.0
    %128 = vmatpush1.msra.mxu0 0.0
    %129 = vmatprep.subr.mxu0 0.0
    %130 = vmatpush1.msra.mxu0 0.0
    %131 = vmatprep.subr.mxu0 0.0
    %132 = vmatpush1.msra.mxu0 0.0
    %133 = vmatprep.mubr.f32.mxu0 0.0
    %134 = vmatmul.mubr.f32.gmra.mrb[0].mxu0 %v51
    %v135 = vpop.f32.mrb[0].mxu0
    %v136 = vadd.f32 0.0, %v135
    %v137 = vpop.f32.mrb[0].mxu0
    %138 = vmatprep.mubr.f32.mxu0 0.0
    %139 = vmatmul.mubr.f32.gmra.mrb[0].mxu0 %v52
    %v140 = vpop.f32.mrb[0].mxu0
    %v141 = vadd.f32 0.0, %v140
    %v142 = vpop.f32.mrb[0].mxu0
    %143 = vdwg.mxu0
    %v144 = vadd.f32 %v49, %v136
    %v145 = vadd.f32 %v50, %v141
    %146 = vst [vmem:[#allocation2] sm:$0xff] %v144
    %147 = vst [vmem:[#allocation2 + $0x8] sm:$0xff] %v145
    // Predicated region
    $region26: #{tpu_custom_call.1} parent=1 // pred_check
      %p148 = pneg %p43
    $region27: #{tpu_custom_call.1} parent=1 // pred_check_branch
      %150 = sbr.rel (%p148) target = $region29
    $region28: #{tpu_custom_call.1} parent=1 // pred_region
      %v151 = vld [vmem:[#allocation2] sm:$0xff]
      %v152 = vld [vmem:[#allocation2 + $0x8] sm:$0xff]
      %v153 = vld [vmem:[%s2] sm:$0x1]
      %v155 = vlaneseq
      %v156 = vshrl.u32 %v155, 7
      %v157 = vsub.s32 0, %v156
      %v158 = vrot.slane %v153, %v157
      %v160 = vadd.f32 %v151, %v158
      %v161 = vadd.f32 %v152, %v158
      %162 = vst [vmem:[#allocation8] sm:$0xff] %v160
      %163 = vst [vmem:[#allocation8 + $0x8] sm:$0xff] %v161
    $region29: #{tpu_custom_call.1} parent=1 // pred_fallthru
      _
    // Predicated region
    $region30: #{tpu_custom_call.1} parent=1 // pred_check
      _
    $region31: #{tpu_custom_call.1} parent=1 // pred_check_branch
      %165 = sbr.rel (0) target = $region33
    $region32: #{tpu_custom_call.1} parent=1 // pred_region
      %s167 = ssub.s32 256, 256
      %168 = vsyncadd [#allocation5], %s167
      %s169 = sshll.u32 [#allocation8], 4
      %s170 = int_to_ptr.vmem [resolvable:$true] %s169
      %175 = dma.vmem_to_hbm [thread:$0]  %s170, 256, %s3, [#allocation5], 128, 128, 8
    $region33: #{tpu_custom_call.1} parent=1 // pred_fallthru
      _
    // Predicated region
    $region34: #{tpu_custom_call.1} parent=1 // pred_check
      _
    $region35: #{tpu_custom_call.1} parent=1 // pred_check_branch
      %177 = sbr.rel (0) target = $region37
    $region36: #{tpu_custom_call.1} parent=1 // pred_region
      %178 = dma.done [#allocation5], 256
    $region37: #{tpu_custom_call.1} parent=1 // pred_fallthru
      _
    %179 = vsyncpa [#allocation4], 1
    %180 = vsyncpa [#allocation7], 1
    %181 = vsyncpa [#allocation5], 1

</llo_original>
